<compile_context>
chip_gen: v7x
topology: tpu7x:2x2x1
jax: 0.10.0
libtpu: 0.0.40
codegen_flags: <defaults>
</compile_context>

<pallas_src>
import math
import functools

import jax
import jax.numpy as jnp
from jax import lax
from jax.experimental import pallas as pl
from jax.experimental.pallas import tpu as pltpu


def mhsa_kernel(x_ref, wqkv_ref, bqkv_ref, wo_ref, bo_ref,
                out_ref, attn_ref, acc_ref, *, head_dim):
    """One (batch, head) tile per grid step.

    x_ref    : (1, S, D)      compute dtype (resident across the head axis)
    wqkv_ref : (1, D, 3*hd)   this head's fused [q|k|v] weight columns
    bqkv_ref : (1, 1, 3*hd)   this head's fused bias (f32)
    wo_ref   : (1, hd, D)     this head's out-projection rows
    bo_ref   : (1, D)         out-projection bias (f32)
    out_ref  : (1, S, D)      accumulated over heads (written at last head)
    attn_ref : (1, 1, S, S)   this head's attention weights
    acc_ref  : (S, D) f32     VMEM scratch accumulator for the out projection
    """
    h = pl.program_id(1)
    nh = pl.num_programs(1)
    hd = head_dim

    @pl.when(h == 0)
    def _init():
        acc_ref[...] = jnp.zeros_like(acc_ref)

    x = x_ref[0]                              # (S, D), compute dtype
    cd = x.dtype

    # Fused per-head QKV projection: one MXU matmul, f32 accumulation.
    qkv = jnp.dot(x, wqkv_ref[0], preferred_element_type=jnp.float32)
    qkv = qkv + bqkv_ref[0]                   # (S, 3*hd) f32

    scale = 1.0 / math.sqrt(hd)
    q = qkv[:, 0 * hd:1 * hd] * scale         # fold 1/sqrt(hd) into q (f32)
    k = qkv[:, 1 * hd:2 * hd]
    v = qkv[:, 2 * hd:3 * hd]

    # scores = (q * scale) @ k^T   (NT contraction, f32 accumulation on MXU)
    scores = lax.dot_general(q.astype(cd), k.astype(cd),
                             dimension_numbers=(((1,), (1,)), ((), ())),
                             preferred_element_type=jnp.float32)     # (S, S)

    # Numerically stable softmax; normalization via approx reciprocal (EUP slot).
    m = jnp.max(scores, axis=-1, keepdims=True)
    e = jnp.exp(scores - m)
    s = jnp.sum(e, axis=-1, keepdims=True)
    w = e * pl.reciprocal(s, approx=True)                            # (S, S) f32

    # TODO(synk): attention dropout is identity in eval mode; not applied here.
    attn_ref[0, 0] = w.astype(attn_ref.dtype)

    # ctx_h = softmax @ v_h ; accumulate its out-projection contribution.
    ctx = jnp.dot(w.astype(cd), v.astype(cd),
                  preferred_element_type=jnp.float32)                # (S, hd)
    acc_ref[...] += jnp.dot(ctx.astype(cd), wo_ref[0],
                            preferred_element_type=jnp.float32)      # (S, D)

    @pl.when(h == nh - 1)
    def _finalize():
        out_ref[0] = (acc_ref[...] + bo_ref[...]).astype(out_ref.dtype)


def multihead_self_attention(x, params, num_heads, compute_dtype=jnp.bfloat16):
    """x: [B, S, D] f32. params: wq/wk/wv/wo [D,D] (pre-transposed), bq/bk/bv/bo [1,D].
    Returns (output [B,S,D] f32, attn_weights [B,H,S,S] f32).
    compute_dtype: dtype of MXU matmul operands (bf16 fast path, f32 exact path)."""
    B, S, D = x.shape
    assert D % num_heads == 0, "d_model must be divisible by num_heads"
    hd = D // num_heads

    # Fused per-head QKV weights/biases: (H, D, 3*hd) / (H, 1, 3*hd).
    w3 = jnp.stack([params["wq"], params["wk"], params["wv"]], axis=0)       # (3, D, D)
    w_qkv = jnp.transpose(w3.reshape(3, D, num_heads, hd),
                          (2, 1, 0, 3)).reshape(num_heads, D, 3 * hd)
    b3 = jnp.stack([params["bq"], params["bk"], params["bv"]], axis=0)       # (3, 1, D)
    b_qkv = jnp.transpose(b3.reshape(3, 1, num_heads, hd),
                          (2, 1, 0, 3)).reshape(num_heads, 1, 3 * hd)
    wo_h = params["wo"].reshape(num_heads, hd, D)                            # (H, hd, D)
    bo = params["bo"]                                                        # (1, D)

    # Cast MXU operands; keep biases / accumulators / softmax in f32.
    x_c = x.astype(compute_dtype)
    w_qkv = w_qkv.astype(compute_dtype)
    wo_h = wo_h.astype(compute_dtype)
    b_qkv = b_qkv.astype(jnp.float32)

    kernel = functools.partial(mhsa_kernel, head_dim=hd)

    # NOTE: production S/D should be multiples of (8, 128) for lane-dense stores;
    # full-dim blocks below keep small toy shapes legal.
    # TODO(synk): optional attention mask and flash-style Sq/KV tiling (needed for
    # very large S when attn weights are not returned) are not implemented.
    out, attn = pl.pallas_call(
        kernel,
        out_shape=(
            jax.ShapeDtypeStruct((B, S, D), x.dtype),
            jax.ShapeDtypeStruct((B, num_heads, S, S), jnp.float32),
        ),
        grid_spec=pltpu.PrefetchScalarGridSpec(
            num_scalar_prefetch=0,
            grid=(B, num_heads),
            in_specs=[
                pl.BlockSpec((1, S, D), lambda b, h: (b, 0, 0)),         # x (resident over h)
                pl.BlockSpec((1, D, 3 * hd), lambda b, h: (h, 0, 0)),    # fused qkv weights
                pl.BlockSpec((1, 1, 3 * hd), lambda b, h: (h, 0, 0)),    # fused qkv bias
                pl.BlockSpec((1, hd, D), lambda b, h: (h, 0, 0)),        # wo row slice
                pl.BlockSpec((1, D), lambda b, h: (0, 0)),               # bo
            ],
            out_specs=[
                pl.BlockSpec((1, S, D), lambda b, h: (b, 0, 0)),         # out (accum over h)
                pl.BlockSpec((1, 1, S, S), lambda b, h: (b, h, 0, 0)),   # attn per (b, h)
            ],
            scratch_shapes=[pltpu.VMEM((S, D), jnp.float32)],            # out-proj accumulator
        ),
        compiler_params=pltpu.CompilerParams(
            dimension_semantics=("parallel", "arbitrary"),
            vmem_limit_bytes=48 * 1024 * 1024,
        ),
    )(x_c, w_qkv, b_qkv, wo_h, bo)
    return out, attn


def reference(x, params, num_heads):
    """Plain-JAX f32 reference matching the PyTorch forward (eval mode, mask=None)."""
    B, S, D = x.shape
    hd = D // num_heads
    q = x @ params["wq"] + params["bq"]
    k = x @ params["wk"] + params["bk"]
    v = x @ params["wv"] + params["bv"]

    def split(t):
        return t.reshape(B, S, num_heads, hd).transpose(0, 2, 1, 3)     # (B,H,S,hd)

    q, k, v = split(q), split(k), split(v)
    scores = jnp.einsum("bhqd,bhkd->bhqk", q, k) / math.sqrt(hd)
    attn = jax.nn.softmax(scores, axis=-1)
    ctx = jnp.einsum("bhqk,bhkd->bhqd", attn, v)
    ctx = ctx.transpose(0, 2, 1, 3).reshape(B, S, D)
    out = ctx @ params["wo"] + params["bo"]
    return out, attn


def init_params(key, d_model):
    # Mimic nn.Linear defaults: uniform(-1/sqrt(fan_in), 1/sqrt(fan_in)).
    bound = 1.0 / math.sqrt(d_model)
    keys = jax.random.split(key, 8)

    def w(k):  # stored as [D_in, D_out] (torch weight transposed)
        return jax.random.uniform(k, (d_model, d_model), jnp.float32, -bound, bound)

    def b(k):
        return jax.random.uniform(k, (1, d_model), jnp.float32, -bound, bound)

    return {
        "wq": w(keys[0]), "bq": b(keys[1]),
        "wk": w(keys[2]), "bk": b(keys[3]),
        "wv": w(keys[4]), "bv": b(keys[5]),
        "wo": w(keys[6]), "bo": b(keys[7]),
    }


if __name__ == "__main__":
    B, S, D, H = 2, 8, 32, 4
    key = jax.random.PRNGKey(0)
    k_x, k_p = jax.random.split(key)
    x = jax.random.normal(k_x, (B, S, D), jnp.float32)
    params = init_params(k_p, D)

    out_ref, attn_ref = reference(x, params, H)

    # Exact-semantics path (f32 MXU operands).
    out32, attn32 = multihead_self_attention(x, params, H, compute_dtype=jnp.float32)
    out32 = jax.block_until_ready(out32)
    attn32 = jax.block_until_ready(attn32)
    assert out32.shape == (B, S, D) and attn32.shape == (B, H, S, S)
    assert jnp.allclose(out32, out_ref, atol=2e-3, rtol=2e-3)
    assert jnp.allclose(attn32, attn_ref, atol=2e-3, rtol=2e-3)

    # Fast path (bf16 MXU operands, f32 accumulation) — looser tolerance.
    out16, attn16 = multihead_self_attention(x, params, H, compute_dtype=jnp.bfloat16)
    out16 = jax.block_until_ready(out16)
    attn16 = jax.block_until_ready(attn16)
    assert jnp.allclose(out16, out_ref, atol=5e-2, rtol=5e-2)
    assert jnp.allclose(attn16, attn_ref, atol=5e-2, rtol=5e-2)

    print("KERNEL_OK")
</pallas_src>

<mosaic_0001>
module attributes {stable_mosaic.version = 11 : i64} {
  func.func @mhsa_kernel(%arg0: i32, %arg1: i32, %arg2: memref<1x8x32xf32, #tpu.memory_space<vmem>>, %arg3: memref<1x32x24xf32, #tpu.memory_space<vmem>>, %arg4: memref<1x1x24xf32, #tpu.memory_space<vmem>>, %arg5: memref<1x8x32xf32, #tpu.memory_space<vmem>>, %arg6: memref<1x32xf32, #tpu.memory_space<vmem>>, %arg7: memref<1x8x32xf32, #tpu.memory_space<vmem>>, %arg8: memref<1x1x8x8xf32, #tpu.memory_space<vmem>>, %arg9: memref<8x32xf32, #tpu.memory_space<vmem>>) attributes {dimension_semantics = [#tpu.dimension_semantics<parallel>, #tpu.dimension_semantics<arbitrary>], iteration_bounds = array<i64: 2, 4>, scalar_prefetch = 0 : i64, scratch_operands = 1 : i64, tpu.core_type = #tpu.core_type<tc>, window_params = [{transform_indices = @transform_0, window_bounds = array<i64: 1, 8, 32>}, {transform_indices = @transform_1, window_bounds = array<i64: 1, 32, 24>}, {transform_indices = @transform_2, window_bounds = array<i64: 1, 1, 24>}, {transform_indices = @transform_3, window_bounds = array<i64: 1, 8, 32>}, {pipeline_mode = #tpu.pipeline_mode<synchronous>, transform_indices = @transform_4, window_bounds = array<i64: 1, 32>}, {transform_indices = @transform_5, window_bounds = array<i64: 1, 8, 32>}, {transform_indices = @transform_6, window_bounds = array<i64: 1, 1, 8, 8>}]} {
    %c0_i32 = arith.constant 0 : i32
    %0 = arith.cmpi eq, %arg1, %c0_i32 : i32
    %1 = arith.extui %0 : i1 to i32
    %c0_i32_0 = arith.constant 0 : i32
    %2 = arith.cmpi ne, %1, %c0_i32_0 : i32
    scf.if %2 {
      %cst_27 = arith.constant 0.000000e+00 : f32
      %41 = vector.broadcast %cst_27 : f32 to vector<8x32xf32>
      %c0_28 = arith.constant 0 : index
      %c0_29 = arith.constant 0 : index
      %42 = vector.load %arg9[%c0_28, %c0_29] : memref<8x32xf32, #tpu.memory_space<vmem>>, vector<8x32xf32>
      tpu.vector_store %arg9[%c0_28, %c0_29], %41 {strides = array<i32>} : memref<8x32xf32, #tpu.memory_space<vmem>>, vector<8x32xf32>,
    } else {
    }
    %c0 = arith.constant 0 : index
    %c0_1 = arith.constant 0 : index
    %c0_2 = arith.constant 0 : index
    %3 = vector.load %arg2[%c0, %c0_1, %c0_2] : memref<1x8x32xf32, #tpu.memory_space<vmem>>, vector<1x8x32xf32>
    %4 = vector.shape_cast %3 : vector<1x8x32xf32> to vector<8x32xf32>
    %c0_3 = arith.constant 0 : index
    %c0_4 = arith.constant 0 : index
    %c0_5 = arith.constant 0 : index
    %5 = vector.load %arg3[%c0_3, %c0_4, %c0_5] : memref<1x32x24xf32, #tpu.memory_space<vmem>>, vector<1x32x24xf32>
    %6 = vector.shape_cast %5 : vector<1x32x24xf32> to vector<32x24xf32>
    %cst = arith.constant dense<0.000000e+00> : vector<8x24xf32>
    %7 = tpu.matmul %4, %6, %cst {dimension_numbers = #tpu.dot_dimension_numbers<[1], [0], [0], [1], [0, 0, 1, 1], [], []>} : vector<8x32xf32>, vector<32x24xf32>, vector<8x24xf32> -> vector<8x24xf32>
    %c0_6 = arith.constant 0 : index
    %c0_7 = arith.constant 0 : index
    %c0_8 = arith.constant 0 : index
    %8 = vector.load %arg4[%c0_6, %c0_7, %c0_8] : memref<1x1x24xf32, #tpu.memory_space<vmem>>, vector<1x1x24xf32>
    %9 = vector.shape_cast %8 : vector<1x1x24xf32> to vector<1x24xf32>
    %10 = vector.broadcast %9 : vector<1x24xf32> to vector<8x24xf32>
    %11 = arith.addf %7, %10 : vector<8x24xf32>
    %12 = vector.extract_strided_slice %11 {offsets = [0, 0], sizes = [8, 8], strides = [1, 1]} : vector<8x24xf32> to vector<8x8xf32>
    %cst_9 = arith.constant 0.353553385 : f32
    %13 = vector.broadcast %cst_9 : f32 to vector<8x8xf32>
    %14 = arith.mulf %12, %13 : vector<8x8xf32>
    %15 = vector.extract_strided_slice %11 {offsets = [0, 8], sizes = [8, 8], strides = [1, 1]} : vector<8x24xf32> to vector<8x8xf32>
    %16 = vector.extract_strided_slice %11 {offsets = [0, 16], sizes = [8, 8], strides = [1, 1]} : vector<8x24xf32> to vector<8x8xf32>
    %cst_10 = arith.constant dense<0.000000e+00> : vector<8x8xf32>
    %17 = tpu.matmul %14, %15, %cst_10 {dimension_numbers = #tpu.dot_dimension_numbers<[1], [1], [0], [0], [0, 0, 1, 0], [], []>} : vector<8x8xf32>, vector<8x8xf32>, vector<8x8xf32> -> vector<8x8xf32>
    %cst_11 = arith.constant dense<0xFF800000> : vector<8xf32>
    %18 = vector.multi_reduction <maximumf>, %17, %cst_11 [1] : vector<8x8xf32> to vector<8xf32>
    %19 = vector.shape_cast %18 : vector<8xf32> to vector<8x1xf32>
    %20 = vector.broadcast %19 : vector<8x1xf32> to vector<8x8xf32>
    %21 = arith.subf %17, %20 : vector<8x8xf32>
    %22 = math.exp %21 : vector<8x8xf32>
    %cst_12 = arith.constant dense<0.000000e+00> : vector<8xf32>
    %23 = vector.multi_reduction <add>, %22, %cst_12 [1] : vector<8x8xf32> to vector<8xf32>
    %24 = vector.shape_cast %23 : vector<8xf32> to vector<8x1xf32>
    %25 = tpu.reciprocal %24 {approx = true} : vector<8x1xf32> -> vector<8x1xf32>
    %26 = vector.broadcast %25 : vector<8x1xf32> to vector<8x8xf32>
    %27 = arith.mulf %22, %26 : vector<8x8xf32>
    %c0_13 = arith.constant 0 : index
    %c0_14 = arith.constant 0 : index
    %c0_15 = arith.constant 0 : index
    %c0_16 = arith.constant 0 : index
    %28 = vector.load %arg8[%c0_13, %c0_14, %c0_15, %c0_16] : memref<1x1x8x8xf32, #tpu.memory_space<vmem>>, vector<1x1x8x8xf32>
    %29 = vector.shape_cast %28 : vector<1x1x8x8xf32> to vector<8x8xf32>
    %30 = vector.shape_cast %27 : vector<8x8xf32> to vector<1x1x8x8xf32>
    tpu.vector_store %arg8[%c0_13, %c0_14, %c0_15, %c0_16], %30 {strides = array<i32>} : memref<1x1x8x8xf32, #tpu.memory_space<vmem>>, vector<1x1x8x8xf32>,
    %cst_17 = arith.constant dense<0.000000e+00> : vector<8x8xf32>
    %31 = tpu.matmul %27, %16, %cst_17 {dimension_numbers = #tpu.dot_dimension_numbers<[1], [0], [0], [1], [0, 0, 1, 1], [], []>} : vector<8x8xf32>, vector<8x8xf32>, vector<8x8xf32> -> vector<8x8xf32>
    %c0_18 = arith.constant 0 : index
    %c0_19 = arith.constant 0 : index
    %32 = vector.load %arg9[%c0_18, %c0_19] : memref<8x32xf32, #tpu.memory_space<vmem>>, vector<8x32xf32>
    %c0_20 = arith.constant 0 : index
    %c0_21 = arith.constant 0 : index
    %c0_22 = arith.constant 0 : index
    %33 = vector.load %arg5[%c0_20, %c0_21, %c0_22] : memref<1x8x32xf32, #tpu.memory_space<vmem>>, vector<1x8x32xf32>
    %34 = vector.shape_cast %33 : vector<1x8x32xf32> to vector<8x32xf32>
    %cst_23 = arith.constant dense<0.000000e+00> : vector<8x32xf32>
    %35 = tpu.matmul %31, %34, %cst_23 {dimension_numbers = #tpu.dot_dimension_numbers<[1], [0], [0], [1], [0, 0, 1, 1], [], []>} : vector<8x8xf32>, vector<8x32xf32>, vector<8x32xf32> -> vector<8x32xf32>
    %36 = arith.addf %32, %35 : vector<8x32xf32>
    %c0_24 = arith.constant 0 : index
    %c0_25 = arith.constant 0 : index
    %37 = vector.load %arg9[%c0_24, %c0_25] : memref<8x32xf32, #tpu.memory_space<vmem>>, vector<8x32xf32>
    tpu.vector_store %arg9[%c0_24, %c0_25], %36 {strides = array<i32>} : memref<8x32xf32, #tpu.memory_space<vmem>>, vector<8x32xf32>,
    %c3_i32 = arith.constant 3 : i32
    %38 = arith.cmpi eq, %arg1, %c3_i32 : i32
    %39 = arith.extui %38 : i1 to i32
    %c0_i32_26 = arith.constant 0 : i32
    %40 = arith.cmpi ne, %39, %c0_i32_26 : i32
    scf.if %40 {
      %c0_27 = arith.constant 0 : index
      %c0_28 = arith.constant 0 : index
      %41 = vector.load %arg9[%c0_27, %c0_28] : memref<8x32xf32, #tpu.memory_space<vmem>>, vector<8x32xf32>
      %c0_29 = arith.constant 0 : index
      %c0_30 = arith.constant 0 : index
      %42 = vector.load %arg6[%c0_29, %c0_30] : memref<1x32xf32, #tpu.memory_space<vmem>>, vector<1x32xf32>
      %43 = vector.broadcast %42 : vector<1x32xf32> to vector<8x32xf32>
      %44 = arith.addf %41, %43 : vector<8x32xf32>
      %c0_31 = arith.constant 0 : index
      %c0_32 = arith.constant 0 : index
      %c0_33 = arith.constant 0 : index
      %45 = vector.load %arg7[%c0_31, %c0_32, %c0_33] : memref<1x8x32xf32, #tpu.memory_space<vmem>>, vector<1x8x32xf32>
      %46 = vector.shape_cast %45 : vector<1x8x32xf32> to vector<8x32xf32>
      %47 = vector.shape_cast %44 : vector<8x32xf32> to vector<1x8x32xf32>
      tpu.vector_store %arg7[%c0_31, %c0_32, %c0_33], %47 {strides = array<i32>} : memref<1x8x32xf32, #tpu.memory_space<vmem>>, vector<1x8x32xf32>,
    } else {
    }
    return
  }
  func.func @transform_0(%arg0: i32, %arg1: i32) -> (i32, i32, i32) {
    %c0_i32 = arith.constant 0 : i32
    %c0_i32_0 = arith.constant 0 : i32
    %c0_i32_1 = arith.constant 0 : i32
    return %arg0, %c0_i32, %c0_i32_0 : i32, i32, i32
  }
  func.func @transform_1(%arg0: i32, %arg1: i32) -> (i32, i32, i32) {
    %c0_i32 = arith.constant 0 : i32
    %c0_i32_0 = arith.constant 0 : i32
    %c0_i32_1 = arith.constant 0 : i32
    return %arg1, %c0_i32, %c0_i32_0 : i32, i32, i32
  }
  func.func @transform_2(%arg0: i32, %arg1: i32) -> (i32, i32, i32) {
    %c0_i32 = arith.constant 0 : i32
    %c0_i32_0 = arith.constant 0 : i32
    %c0_i32_1 = arith.constant 0 : i32
    return %arg1, %c0_i32, %c0_i32_0 : i32, i32, i32
  }
  func.func @transform_3(%arg0: i32, %arg1: i32) -> (i32, i32, i32) {
    %c0_i32 = arith.constant 0 : i32
    %c0_i32_0 = arith.constant 0 : i32
    %c0_i32_1 = arith.constant 0 : i32
    return %arg1, %c0_i32, %c0_i32_0 : i32, i32, i32
  }
  func.func @transform_4(%arg0: i32, %arg1: i32) -> (i32, i32) {
    %c0_i32 = arith.constant 0 : i32
    %c0_i32_0 = arith.constant 0 : i32
    %c0_i32_1 = arith.constant 0 : i32
    return %c0_i32, %c0_i32_0 : i32, i32
  }
  func.func @transform_5(%arg0: i32, %arg1: i32) -> (i32, i32, i32) {
    %c0_i32 = arith.constant 0 : i32
    %c0_i32_0 = arith.constant 0 : i32
    %c0_i32_1 = arith.constant 0 : i32
    return %arg0, %c0_i32, %c0_i32_0 : i32, i32, i32
  }
  func.func @transform_6(%arg0: i32, %arg1: i32) -> (i32, i32, i32, i32) {
    %c0_i32 = arith.constant 0 : i32
    %c0_i32_0 = arith.constant 0 : i32
    %c0_i32_1 = arith.constant 0 : i32
    return %arg0, %arg1, %c0_i32, %c0_i32_0 : i32, i32, i32, i32
  }
}

</mosaic_0001>

<llo_original>
// kernel: tpu_custom_call.1
$region0: #{tpu_custom_call.1}
  #allocation0 [shape = 'u32[]', space=smem, size = 0x4, offset = 0x4, fixed_abs, tag = 'smem constant byte address 0x4 - core index']
  #allocation1 [shape = 'u32[144,128]{1,0:T(1,128)}', space=vmem, size = 0x12000, scoped, tag = 'internal scratch']
  #allocation2 [shape = 'f32[8,32]{1,0:T(8,128)}', space=vmem, size = 0x1000, scoped, tag = 'scratch operand']
  %s0 = inlined_call_operand.vmem [shape: f32[2,8,32], index: 0, kind: input, shape index: {}]
  %s1 = inlined_call_operand.vmem [shape: f32[4,32,24], index: 1, kind: input, shape index: {}]
  %s2 = inlined_call_operand.vmem [shape: f32[4,1,24], index: 2, kind: input, shape index: {}]
  %s3 = inlined_call_operand.vmem [shape: f32[4,8,32], index: 3, kind: input, shape index: {}]
  %s4 = inlined_call_operand.vmem [shape: f32[1,32], index: 4, kind: input, shape index: {}]
  %s5 = inlined_call_operand.hbm [shape: f32[2,8,32], index: 5, kind: output, shape index: {0}]
  %s6 = inlined_call_operand.hbm [shape: f32[2,4,8,8], index: 6, kind: output, shape index: {1}]
  %7 = xla_tuple %s5, %s6
  %s8 = sld [smem:[#allocation0]]
  $region69: #{tpu_custom_call.1} parent=0
    _
  %s10 = ssub.s32 1, %s8
  %s11 = scalar_select 0, %s10, %s8
  $region1: #{tpu_custom_call.1} parent=0
    #allocation3 [shape = 'u8[8192]{0}', space=vmem, size = 0x2000, scoped, tag = 'output window, operand 0']
    #allocation4 [shape = 's32[2]{0}', space=sflag, size = 0x8, scoped, tag = 'scoped memory for tpu_custom_call.1']
    #allocation5 [shape = 'u8[8192]{0}', space=vmem, size = 0x2000, scoped, tag = 'output window, operand 1']
    #allocation6 [shape = 's32[2]{0}', space=sflag, size = 0x8, scoped, tag = 'scoped memory for tpu_custom_call.1']
    %12 = vsyncpa [#allocation4], 0
    %s13 = scalar_lea.sflag [#allocation4], 1
    %14 = vsyncpa %s13, 0
    %15 = vsyncpa [#allocation6], 0
    %s16 = scalar_lea.sflag [#allocation6], 1
    %17 = vsyncpa %s16, 0
    loop: start=0, step=1, limit=10
    $region2: #{tpu_custom_call.1} parent=1 // loop_pre_header
      _
    $region3: #{tpu_custom_call.1} parent=1 // loop_header
      %s19 = sphi 0, %s23
      %p20 = scmp.ge.s32.totalorder %s19, 10
      %s26 = sphi 0, %s38
      %s27 = sphi 0, %s34
      %s28 = sphi 0, %s26
      %s29 = sphi 0, %s27
      %s30 = sphi 0, %s28
      %s31 = sphi 0, %s29
      %s41 = sphi 0, %s43
      %s44 = sphi 0, %s41
      %s45 = sphi 0, %s44
      %s61 = sphi 0, %s45
      %s67 = sphi 0, %s69
      %s70 = sphi 0, %s67
      %s71 = sphi 0, %s70
      %s87 = sphi 0, %s71
      %s93 = sphi 0, %s95
      %s96 = sphi 0, %s93
      %s97 = sphi 0, %s96
      %s113 = sphi 0, %s97
      %s119 = sphi 0, %s121
      %s122 = sphi 0, %s119
      %s123 = sphi 0, %s122
      %s139 = sphi 0, %s123
      %s143 = sphi 0, %s143
      %s145 = sphi 0, %s143
      %s146 = sphi 0, %s145
      %s160 = sphi 0, %s146
      %s166 = sphi 0, %s168
      %s169 = sphi 0, %s166
      %s170 = sphi 0, %s169
      %s186 = sphi 0, %s170
      %s194 = sphi 0, %s196
      %s197 = sphi 0, %s194
      %s198 = sphi 0, %s197
      %s214 = sphi 0, %s198
    $region4: #{tpu_custom_call.1} parent=1 // loop_header_branch
      %22 = sbr.rel (%p20) target = $region8
    $region5: #{tpu_custom_call.1} parent=1 // loop_body
      %s24 = ssub.s32 %s19, 1
      %s25 = ssub.s32 %s19, 2
      %s32 = sadd.s32 1, %s27
      %p33 = scmp.ge.s32.totalorder %s32, 4
      %s34 = scalar_select %p33, 0, %s32
      %s35 = sadd.s32 1, %s26
      %s36 = scalar_select %p33, %s35, %s26
      %p37 = scmp.ge.s32.totalorder %s36, 2
      %s38 = scalar_select %p37, 0, %s36
      %s39 = ssub.s32 %s26, %s38
      %p40 = scmp.eq.s32.totalorder %s39, 0
      %s42 = sadd.s32 %s41, 1
      %s43 = scalar_select %p40, %s41, %s42
      %p46 = pneg %p40
      %p47 = scmp.eq.s32.totalorder %s19, 7
      %p48 = por %p46, %p47
      %p49 = scmp.ne.s32.totalorder %s41, %s44
      %p50 = scmp.eq.s32.totalorder %s19, 0
      %p51 = por %p49, %p50
      %p52 = scmp.ne.s32.totalorder %s41, %s44
      %p53 = scmp.eq.s32.totalorder %s24, 7
      %p54 = por %p52, %p53
      %p55 = scmp.ne.s32.totalorder %s44, %s45
      %p56 = scmp.eq.s32.totalorder %s24, 0
      %p57 = por %p55, %p56
      %p58 = scmp.ne.s32.totalorder %s44, %s45
      %p59 = scmp.eq.s32.totalorder %s25, 7
      %p60 = por %p58, %p59
      %p62 = scmp.ne.s32.totalorder %s45, %s61
      %p63 = scmp.eq.s32.totalorder %s25, 0
      %p64 = por %p62, %p63
      %s65 = ssub.s32 %s27, %s34
      %p66 = scmp.eq.s32.totalorder %s65, 0
      %s68 = sadd.s32 %s67, 1
      %s69 = scalar_select %p66, %s67, %s68
      %p72 = pneg %p66
      %p73 = scmp.eq.s32.totalorder %s19, 7
      %p74 = por %p72, %p73
      %p75 = scmp.ne.s32.totalorder %s67, %s70
      %p76 = scmp.eq.s32.totalorder %s19, 0
      %p77 = por %p75, %p76
      %p78 = scmp.ne.s32.totalorder %s67, %s70
      %p79 = scmp.eq.s32.totalorder %s24, 7
      %p80 = por %p78, %p79
      %p81 = scmp.ne.s32.totalorder %s70, %s71
      %p82 = scmp.eq.s32.totalorder %s24, 0
      %p83 = por %p81, %p82
      %p84 = scmp.ne.s32.totalorder %s70, %s71
      %p85 = scmp.eq.s32.totalorder %s25, 7
      %p86 = por %p84, %p85
      %p88 = scmp.ne.s32.totalorder %s71, %s87
      %p89 = scmp.eq.s32.totalorder %s25, 0
      %p90 = por %p88, %p89
      %s91 = ssub.s32 %s27, %s34
      %p92 = scmp.eq.s32.totalorder %s91, 0
      %s94 = sadd.s32 %s93, 1
      %s95 = scalar_select %p92, %s93, %s94
      %p98 = pneg %p92
      %p99 = scmp.eq.s32.totalorder %s19, 7
      %p100 = por %p98, %p99
      %p101 = scmp.ne.s32.totalorder %s93, %s96
      %p102 = scmp.eq.s32.totalorder %s19, 0
      %p103 = por %p101, %p102
      %p104 = scmp.ne.s32.totalorder %s93, %s96
      %p105 = scmp.eq.s32.totalorder %s24, 7
      %p106 = por %p104, %p105
      %p107 = scmp.ne.s32.totalorder %s96, %s97
      %p108 = scmp.eq.s32.totalorder %s24, 0
      %p109 = por %p107, %p108
      %p110 = scmp.ne.s32.totalorder %s96, %s97
      %p111 = scmp.eq.s32.totalorder %s25, 7
      %p112 = por %p110, %p111
      %p114 = scmp.ne.s32.totalorder %s97, %s113
      %p115 = scmp.eq.s32.totalorder %s25, 0
      %p116 = por %p114, %p115
      %s117 = ssub.s32 %s27, %s34
      %p118 = scmp.eq.s32.totalorder %s117, 0
      %s120 = sadd.s32 %s119, 1
      %s121 = scalar_select %p118, %s119, %s120
      %p124 = pneg %p118
      %p125 = scmp.eq.s32.totalorder %s19, 7
      %p126 = por %p124, %p125
      %p127 = scmp.ne.s32.totalorder %s119, %s122
      %p128 = scmp.eq.s32.totalorder %s19, 0
      %p129 = por %p127, %p128
      %p130 = scmp.ne.s32.totalorder %s119, %s122
      %p131 = scmp.eq.s32.totalorder %s24, 7
      %p132 = por %p130, %p131
      %p133 = scmp.ne.s32.totalorder %s122, %s123
      %p134 = scmp.eq.s32.totalorder %s24, 0
      %p135 = por %p133, %p134
      %p136 = scmp.ne.s32.totalorder %s122, %s123
      %p137 = scmp.eq.s32.totalorder %s25, 7
      %p138 = por %p136, %p137
      %p140 = scmp.ne.s32.totalorder %s123, %s139
      %p141 = scmp.eq.s32.totalorder %s25, 0
      %p142 = por %p140, %p141
      %s144 = sadd.s32 %s143, 1
      %p147 = scmp.eq.s32.totalorder %s19, 7
      %p148 = scmp.ne.s32.totalorder %s143, %s145
      %p149 = scmp.eq.s32.totalorder %s19, 0
      %p150 = por %p148, %p149
      %p151 = scmp.ne.s32.totalorder %s143, %s145
      %p152 = scmp.eq.s32.totalorder %s24, 7
      %p153 = por %p151, %p152
      %p154 = scmp.ne.s32.totalorder %s145, %s146
      %p155 = scmp.eq.s32.totalorder %s24, 0
      %p156 = por %p154, %p155
      %p157 = scmp.ne.s32.totalorder %s145, %s146
      %p158 = scmp.eq.s32.totalorder %s25, 7
      %p159 = por %p157, %p158
      %p161 = scmp.ne.s32.totalorder %s146, %s160
      %p162 = scmp.eq.s32.totalorder %s25, 0
      %p163 = por %p161, %p162
      %s164 = ssub.s32 %s26, %s38
      %p165 = scmp.eq.s32.totalorder %s164, 0
      %s167 = sadd.s32 %s166, 1
      %s168 = scalar_select %p165, %s166, %s167
      %p171 = pneg %p165
      %p172 = scmp.eq.s32.totalorder %s19, 7
      %p173 = por %p171, %p172
      %p174 = scmp.ne.s32.totalorder %s166, %s169
      %p175 = scmp.eq.s32.totalorder %s19, 0
      %p176 = por %p174, %p175
      %p177 = scmp.ne.s32.totalorder %s166, %s169
      %p178 = scmp.eq.s32.totalorder %s24, 7
      %p179 = por %p177, %p178
      %p180 = scmp.ne.s32.totalorder %s169, %s170
      %p181 = scmp.eq.s32.totalorder %s24, 0
      %p182 = por %p180, %p181
      %p183 = scmp.ne.s32.totalorder %s169, %s170
      %p184 = scmp.eq.s32.totalorder %s25, 7
      %p185 = por %p183, %p184
      %p187 = scmp.ne.s32.totalorder %s170, %s186
      %p188 = scmp.eq.s32.totalorder %s25, 0
      %p189 = por %p187, %p188
      %s190 = ssub.s32 %s26, %s38
      %s191 = ssub.s32 %s27, %s34
      %s192 = sor.u32 %s190, %s191
      %p193 = scmp.eq.s32.totalorder %s192, 0
      %s195 = sadd.s32 %s194, 1
      %s196 = scalar_select %p193, %s194, %s195
      %p199 = pneg %p193
      %p200 = scmp.eq.s32.totalorder %s19, 7
      %p201 = por %p199, %p200
      %p202 = scmp.ne.s32.totalorder %s194, %s197
      %p203 = scmp.eq.s32.totalorder %s19, 0
      %p204 = por %p202, %p203
      %p205 = scmp.ne.s32.totalorder %s194, %s197
      %p206 = scmp.eq.s32.totalorder %s24, 7
      %p207 = por %p205, %p206
      %p208 = scmp.ne.s32.totalorder %s197, %s198
      %p209 = scmp.eq.s32.totalorder %s24, 0
      %p210 = por %p208, %p209
      %p211 = scmp.ne.s32.totalorder %s197, %s198
      %p212 = scmp.eq.s32.totalorder %s25, 7
      %p213 = por %p211, %p212
      %p215 = scmp.ne.s32.totalorder %s198, %s214
      %p216 = scmp.eq.s32.totalorder %s25, 0
      %p217 = por %p215, %p216
      %p218 = scmp.le.s32.totalorder 1, %s19
      %p219 = scmp.lt.s32.totalorder %s19, 9
      %p220 = pnand %p218, %p219
      %p221 = pneg %p220
      // Predicated region
      $region9: #{tpu_custom_call.1} parent=5 // pred_check
        _
      $region10: #{tpu_custom_call.1} parent=5 // pred_check_branch
        %223 = sbr.rel (%p220) target = $region12
      $region11: #{tpu_custom_call.1} parent=5 // pred_region
        %s224 = ssub.s32 %s19, 1
        // Predicated region
        $region13: #{tpu_custom_call.1} parent=11 // pred_check
          %p225 = pneg %p156
        $region14: #{tpu_custom_call.1} parent=11 // pred_check_branch
          %227 = sbr.rel (%p225) target = $region16
        $region15: #{tpu_custom_call.1} parent=11 // pred_region
          _
        $region16: #{tpu_custom_call.1} parent=11 // pred_fallthru
          _
      $region12: #{tpu_custom_call.1} parent=5 // pred_fallthru
        _
      %p228 = scmp.lt.s32.totalorder %s19, 8
      // Predicated region
      $region17: #{tpu_custom_call.1} parent=5 // pred_check
        %p229 = pneg %p228
      $region18: #{tpu_custom_call.1} parent=5 // pred_check_branch
        %231 = sbr.rel (%p229) target = $region20
      $region19: #{tpu_custom_call.1} parent=5 // pred_region
        // Predicated region
        $region21: #{tpu_custom_call.1} parent=19 // pred_check
          %p232 = pneg %p51
        $region22: #{tpu_custom_call.1} parent=19 // pred_check_branch
          %234 = sbr.rel (%p232) target = $region24
        $region23: #{tpu_custom_call.1} parent=19 // pred_region
          %p235 = scmp.lt.s32.totalorder %s26, 1
          %s236 = scalar_select %p235, %s26, 1
          %s237 = smul.addr %s236, 8
          %s238 = scalar_lea.vmem %s0, %s237
        $region24: #{tpu_custom_call.1} parent=19 // pred_fallthru
          _
        // Predicated region
        $region25: #{tpu_custom_call.1} parent=19 // pred_check
          %p239 = pneg %p77
        $region26: #{tpu_custom_call.1} parent=19 // pred_check_branch
          %241 = sbr.rel (%p239) target = $region28
        $region27: #{tpu_custom_call.1} parent=19 // pred_region
          %p242 = scmp.lt.s32.totalorder %s27, 3
          %s243 = scalar_select %p242, %s27, 3
          %s244 = smul.addr %s243, 4
          %s245 = smul.addr %s244, 8
          %s246 = scalar_lea.vmem %s1, %s245
        $region28: #{tpu_custom_call.1} parent=19 // pred_fallthru
          _
        // Predicated region
        $region29: #{tpu_custom_call.1} parent=19 // pred_check
          %p247 = pneg %p103
        $region30: #{tpu_custom_call.1} parent=19 // pred_check_branch
          %249 = sbr.rel (%p247) target = $region32
        $region31: #{tpu_custom_call.1} parent=19 // pred_region
          %p250 = scmp.lt.s32.totalorder %s27, 3
          %s251 = scalar_select %p250, %s27, 3
          %s252 = scalar_lea.vmem %s2, %s251
        $region32: #{tpu_custom_call.1} parent=19 // pred_fallthru
          _
        // Predicated region
        $region33: #{tpu_custom_call.1} parent=19 // pred_check
          %p253 = pneg %p129
        $region34: #{tpu_custom_call.1} parent=19 // pred_check_branch
          %255 = sbr.rel (%p253) target = $region36
        $region35: #{tpu_custom_call.1} parent=19 // pred_region
          %p256 = scmp.lt.s32.totalorder %s27, 3
          %s257 = scalar_select %p256, %s27, 3
          %s258 = smul.addr %s257, 8
          %s259 = scalar_lea.vmem %s3, %s258
        $region36: #{tpu_custom_call.1} parent=19 // pred_fallthru
          _
      $region20: #{tpu_custom_call.1} parent=5 // pred_fallthru
        _
      %p260 = scmp.le.s32.totalorder 1, %s19
      %p261 = scmp.lt.s32.totalorder %s19, 9
      %p262 = pnand %p260, %p261
      %p263 = pneg %p262
      // Predicated region
      $region37: #{tpu_custom_call.1} parent=5 // pred_check
        _
      $region38: #{tpu_custom_call.1} parent=5 // pred_check_branch
        %265 = sbr.rel (%p262) target = $region40
      $region39: #{tpu_custom_call.1} parent=5 // pred_region
        %s266 = ssub.s32 %s19, 1
        %p267 = scmp.lt.s32.totalorder %s28, 1
        %s268 = scalar_select %p267, %s28, 1
        %s269 = smul.addr %s268, 8
        %s270 = scalar_lea.vmem %s0, %s269
        %p271 = pneg %p57
        %p272 = pneg %p54
        %p273 = scmp.lt.s32.totalorder %s29, 3
        %s274 = scalar_select %p273, %s29, 3
        %s275 = smul.addr %s274, 4
        %s276 = smul.addr %s275, 8
        %s277 = scalar_lea.vmem %s1, %s276
        %p278 = pneg %p83
        %p279 = pneg %p80
        %p280 = scmp.lt.s32.totalorder %s29, 3
        %s281 = scalar_select %p280, %s29, 3
        %s282 = scalar_lea.vmem %s2, %s281
        %p283 = pneg %p109
        %p284 = pneg %p106
        %p285 = scmp.lt.s32.totalorder %s29, 3
        %s286 = scalar_select %p285, %s29, 3
        %s287 = smul.addr %s286, 8
        %s288 = scalar_lea.vmem %s3, %s287
        %p289 = pneg %p135
        %p290 = pneg %p132
        %p291 = pneg %p156
        %p292 = pneg %p153
        %p293 = pneg %p182
        %p294 = pneg %p179
        %s295 = sand.u32 %s169, 1
        %s296 = scalar_lea.sflag [#allocation4], %s295
        %s297 = sand.u32 %s169, 1
        %s298 = smul.addr %s297, 8
        %s299 = scalar_lea.vmem [#allocation3], %s298
        %p300 = pneg %p210
        %p301 = pneg %p207
        %s302 = sand.u32 %s197, 1
        %s303 = scalar_lea.sflag [#allocation6], %s302
        %s304 = sand.u32 %s197, 1
        %s305 = smul.addr %s304, 8
        %s306 = scalar_lea.vmem [#allocation5], %s305
        %p307 = scmp.lt.s32.totalorder %s28, 1
        %s308 = scalar_select %p307, %s28, 1
        %s309 = smul.addr %s308, 8
        %s310 = scalar_lea.vmem %s0, %s309
        %p311 = scmp.lt.s32.totalorder %s29, 3
        %s312 = scalar_select %p311, %s29, 3
        %s313 = smul.addr %s312, 4
        %s314 = smul.addr %s313, 8
        %s315 = scalar_lea.vmem %s1, %s314
        %p316 = scmp.lt.s32.totalorder %s29, 3
        %s317 = scalar_select %p316, %s29, 3
        %s318 = scalar_lea.vmem %s2, %s317
        %p319 = scmp.lt.s32.totalorder %s29, 3
        %s320 = scalar_select %p319, %s29, 3
        %s321 = smul.addr %s320, 8
        %s322 = scalar_lea.vmem %s3, %s321
        %p323 = scmp.eq.s32.totalorder %s29, 0
        // Predicated region
        $region41: #{tpu_custom_call.1} parent=39 // pred_check
          %p324 = pneg %p323
        $region42: #{tpu_custom_call.1} parent=39 // pred_check_branch
          %326 = sbr.rel (%p324) target = $region44
        $region43: #{tpu_custom_call.1} parent=39 // pred_region
          %vm327 = vcmask 261120
          %328 = vst.msk [vmem:[#allocation2] sm:$0xff] %vm327, 0.0
        $region44: #{tpu_custom_call.1} parent=39 // pred_fallthru
          _
        %v329 = vld [vmem:[%s310] sm:$0xff]
        %v330 = vld [vmem:[%s315] sm:$0xff]
        %v331 = vld [vmem:[%s315 + $0x8] sm:$0xff]
        %v332 = vld [vmem:[%s315 + $0x10] sm:$0xff]
        %v333 = vld [vmem:[%s315 + $0x18] sm:$0xff]
        %v334 = vld [vmem:[%s318] sm:$0x1]
        %v336 = vlaneseq
        %v337 = vshrl.u32 %v336, 7
        %v338 = vsub.s32 0, %v337
        %v339 = vrot.slane %v334, %v338
        %vm341 = vcmask 261120
        %v343 = vsel %vm341, %v329, 0
        %345 = vmatprep.subr.mxu0 0.0
        %346 = vmatpush1.msra.mxu0 %v330
        %347 = vmatprep.subr.mxu0 0.0
        %348 = vmatpush1.msra.mxu0 %v331
        %349 = vmatprep.subr.mxu0 0.0
        %350 = vmatpush1.msra.mxu0 %v332
        %351 = vmatprep.subr.mxu0 0.0
        %352 = vmatpush1.msra.mxu0 %v333
        %353 = vmatprep.subr.mxu0 0.0
        %354 = vmatpush1.msra.mxu0 0.0
        %355 = vmatprep.subr.mxu0 0.0
        %356 = vmatpush1.msra.mxu0 0.0
        %357 = vmatprep.subr.mxu0 0.0
        %358 = vmatpush1.msra.mxu0 0.0
        %359 = vmatprep.subr.mxu0 0.0
        %360 = vmatpush1.msra.mxu0 0.0
        %361 = vmatprep.subr.mxu0 0.0
        %362 = vmatpush1.msra.mxu0 0.0
        %363 = vmatprep.subr.mxu0 0.0
        %364 = vmatpush1.msra.mxu0 0.0
        %365 = vmatprep.subr.mxu0 0.0
        %366 = vmatpush1.msra.mxu0 0.0
        %367 = vmatprep.subr.mxu0 0.0
        %368 = vmatpush1.msra.mxu0 0.0
        %369 = vmatprep.subr.mxu0 0.0
        %370 = vmatpush1.msra.mxu0 0.0
        %371 = vmatprep.subr.mxu0 0.0
        %372 = vmatpush1.msra.mxu0 0.0
        %373 = vmatprep.subr.mxu0 0.0
        %374 = vmatpush1.msra.mxu0 0.0
        %375 = vmatprep.subr.mxu0 0.0
        %376 = vmatpush1.msra.mxu0 0.0
        %377 = vmatprep.subr.mxu0 0.0
        %378 = vmatpush1.msra.mxu0 0.0
        %379 = vmatprep.subr.mxu0 0.0
        %380 = vmatpush1.msra.mxu0 0.0
        %381 = vmatprep.subr.mxu0 0.0
        %382 = vmatpush1.msra.mxu0 0.0
        %383 = vmatprep.subr.mxu0 0.0
        %384 = vmatpush1.msra.mxu0 0.0
        %385 = vmatprep.subr.mxu0 0.0
        %386 = vmatpush1.msra.mxu0 0.0
        %387 = vmatprep.subr.mxu0 0.0
        %388 = vmatpush1.msra.mxu0 0.0
        %389 = vmatprep.subr.mxu0 0.0
        %390 = vmatpush1.msra.mxu0 0.0
        %391 = vmatprep.subr.mxu0 0.0
        %392 = vmatpush1.msra.mxu0 0.0
        %393 = vmatprep.subr.mxu0 0.0
        %394 = vmatpush1.msra.mxu0 0.0
        %395 = vmatprep.subr.mxu0 0.0
        %396 = vmatpush1.msra.mxu0 0.0
        %397 = vmatprep.subr.mxu0 0.0
        %398 = vmatpush1.msra.mxu0 0.0
        %399 = vmatprep.subr.mxu0 0.0
        %400 = vmatpush1.msra.mxu0 0.0
        %401 = vmatprep.subr.mxu0 0.0
        %402 = vmatpush1.msra.mxu0 0.0
        %403 = vmatprep.subr.mxu0 0.0
        %404 = vmatpush1.msra.mxu0 0.0
        %405 = vmatprep.subr.mxu0 0.0
        %406 = vmatpush1.msra.mxu0 0.0
        %407 = vmatprep.subr.mxu0 0.0
        %408 = vmatpush1.msra.mxu0 0.0
        %409 = vmatprep.mubr.f32.mxu0 0.0
        %410 = vmatmul.mubr.f32.gmra.mrb[0].mxu0 %v343
        %v411 = vpop.f32.mrb[0].mxu0
        %v412 = vadd.f32 %v339, %v411
        %v413 = vpop.f32.mrb[0].mxu0
        %414 = vdwg.mxu0
        %v415 = vmul.f32 %v412, 0.35355338
        %417 = vrot.lane.b32.xlu0 %v412, 120
        %v418 = vpop.permute.xlu0 %417
        %vm419 = vcmask 64512
        %v421 = vsel %vm419, %v415, 0
        %v423 = vsel %vm419, %v418, 0
        %425 = vmatprep.subr.mxu0 0.0
        %426 = vmatpush1.xpose.msra.mxu0 %v423
        %427 = vmatprep.subr.mxu0 0.0
        %428 = vmatpush1.xpose.msra.mxu0 0.0
        %429 = vmatprep.subr.mxu0 0.0
        %430 = vmatpush1.xpose.msra.mxu0 0.0
        %431 = vmatprep.subr.mxu0 0.0
        %432 = vmatpush1.xpose.msra.mxu0 0.0
        %433 = vmatprep.subr.mxu0 0.0
        %434 = vmatpush1.xpose.msra.mxu0 0.0
        %435 = vmatprep.subr.mxu0 0.0
        %436 = vmatpush1.xpose.msra.mxu0 0.0
        %437 = vmatprep.subr.mxu0 0.0
        %438 = vmatpush1.xpose.msra.mxu0 0.0
        %439 = vmatprep.subr.mxu0 0.0
        %440 = vmatpush1.xpose.msra.mxu0 0.0
        %441 = vmatprep.subr.mxu0 0.0
        %442 = vmatpush1.xpose.msra.mxu0 0.0
        %443 = vmatprep.subr.mxu0 0.0
        %444 = vmatpush1.xpose.msra.mxu0 0.0
        %445 = vmatprep.subr.mxu0 0.0
        %446 = vmatpush1.xpose.msra.mxu0 0.0
        %447 = vmatprep.subr.mxu0 0.0
        %448 = vmatpush1.xpose.msra.mxu0 0.0
        %449 = vmatprep.subr.mxu0 0.0
        %450 = vmatpush1.xpose.msra.mxu0 0.0
        %451 = vmatprep.subr.mxu0 0.0
        %452 = vmatpush1.xpose.msra.mxu0 0.0
        %453 = vmatprep.subr.mxu0 0.0
        %454 = vmatpush1.xpose.msra.mxu0 0.0
        %455 = vmatprep.subr.mxu0 0.0
        %456 = vmatpush1.xpose.msra.mxu0 0.0
        %457 = vmatprep.subr.mxu0 0.0
        %458 = vmatpush1.xpose.msra.mxu0 0.0
        %459 = vmatprep.subr.mxu0 0.0
        %460 = vmatpush1.xpose.msra.mxu0 0.0
        %461 = vmatprep.subr.mxu0 0.0
        %462 = vmatpush1.xpose.msra.mxu0 0.0
        %463 = vmatprep.subr.mxu0 0.0
        %464 = vmatpush1.xpose.msra.mxu0 0.0
        %465 = vmatprep.subr.mxu0 0.0
        %466 = vmatpush1.xpose.msra.mxu0 0.0
        %467 = vmatprep.subr.mxu0 0.0
        %468 = vmatpush1.xpose.msra.mxu0 0.0
        %469 = vmatprep.subr.mxu0 0.0
        %470 = vmatpush1.xpose.msra.mxu0 0.0
        %471 = vmatprep.subr.mxu0 0.0
        %472 = vmatpush1.xpose.msra.mxu0 0.0
        %473 = vmatprep.subr.mxu0 0.0
        %474 = vmatpush1.xpose.msra.mxu0 0.0
        %475 = vmatprep.subr.mxu0 0.0
        %476 = vmatpush1.xpose.msra.mxu0 0.0
        %477 = vmatprep.subr.mxu0 0.0
        %478 = vmatpush1.xpose.msra.mxu0 0.0
        %479 = vmatprep.subr.mxu0 0.0
        %480 = vmatpush1.xpose.msra.mxu0 0.0
        %481 = vmatprep.subr.mxu0 0.0
        %482 = vmatpush1.xpose.msra.mxu0 0.0
        %483 = vmatprep.subr.mxu0 0.0
        %484 = vmatpush1.xpose.msra.mxu0 0.0
        %485 = vmatprep.subr.mxu0 0.0
        %486 = vmatpush1.xpose.msra.mxu0 0.0
        %487 = vmatprep.subr.mxu0 0.0
        %488 = vmatpush1.xpose.msra.mxu0 0.0
        %489 = vmatprep.mubr.f32.mxu0 0.0
        %490 = vmatmul.mubr.f32.gmra.mrb[0].mxu0 %v421
        %v491 = vpop.f32.mrb[0].mxu0
        %v492 = vadd.f32 0.0, %v491
        %v493 = vpop.f32.mrb[0].mxu0
        %494 = vdwg.mxu0
        %v495 = vsel %vm419, %v492, -inf
        %496 = vmax.xlane.f32.xlu0 %v495
        %v497 = vpop.xlane.xlu0 %496
        %v498 = vsub.f32 %v492, %v497
        %v499 = vmul.f32 %v498, 1.442695
        %v500 = vpow.pop %v499
        %v501 = vsel %vm419, %v500, 0.0
        %502 = vadd.xlane.f32.xlu0 %v501
        %v503 = vpop.xlane.xlu0 %502
        %v504 = vrcp.pop %v503
        %v505 = vmul.f32 %v500, %v504
        %506 = vst.msk [vmem:[%s306] sm:$0xff] %vm419, %v505
        %507 = vrot.lane.b32.xlu0 %v412, 112
        %v508 = vpop.permute.xlu0 %507
        %v511 = vsel %vm419, %v505, 0
        %513 = vmatprep.subr.mxu0 0.0
        %514 = vmatpush1.msra.mxu0 %v508
        %515 = vmatprep.subr.mxu0 0.0
        %516 = vmatpush1.msra.mxu0 0.0
        %517 = vmatprep.subr.mxu0 0.0
        %518 = vmatpush1.msra.mxu0 0.0
        %519 = vmatprep.subr.mxu0 0.0
        %520 = vmatpush1.msra.mxu0 0.0
        %521 = vmatprep.subr.mxu0 0.0
        %522 = vmatpush1.msra.mxu0 0.0
        %523 = vmatprep.subr.mxu0 0.0
        %524 = vmatpush1.msra.mxu0 0.0
        %525 = vmatprep.subr.mxu0 0.0
        %526 = vmatpush1.msra.mxu0 0.0
        %527 = vmatprep.subr.mxu0 0.0
        %528 = vmatpush1.msra.mxu0 0.0
        %529 = vmatprep.subr.mxu0 0.0
        %530 = vmatpush1.msra.mxu0 0.0
        %531 = vmatprep.subr.mxu0 0.0
        %532 = vmatpush1.msra.mxu0 0.0
        %533 = vmatprep.subr.mxu0 0.0
        %534 = vmatpush1.msra.mxu0 0.0
        %535 = vmatprep.subr.mxu0 0.0
        %536 = vmatpush1.msra.mxu0 0.0
        %537 = vmatprep.subr.mxu0 0.0
        %538 = vmatpush1.msra.mxu0 0.0
        %539 = vmatprep.subr.mxu0 0.0
        %540 = vmatpush1.msra.mxu0 0.0
        %541 = vmatprep.subr.mxu0 0.0
        %542 = vmatpush1.msra.mxu0 0.0
        %543 = vmatprep.subr.mxu0 0.0
        %544 = vmatpush1.msra.mxu0 0.0
        %545 = vmatprep.subr.mxu0 0.0
        %546 = vmatpush1.msra.mxu0 0.0
        %547 = vmatprep.subr.mxu0 0.0
        %548 = vmatpush1.msra.mxu0 0.0
        %549 = vmatprep.subr.mxu0 0.0
        %550 = vmatpush1.msra.mxu0 0.0
        %551 = vmatprep.subr.mxu0 0.0
        %552 = vmatpush1.msra.mxu0 0.0
        %553 = vmatprep.subr.mxu0 0.0
        %554 = vmatpush1.msra.mxu0 0.0
        %555 = vmatprep.subr.mxu0 0.0
        %556 = vmatpush1.msra.mxu0 0.0
        %557 = vmatprep.subr.mxu0 0.0
        %558 = vmatpush1.msra.mxu0 0.0
        %559 = vmatprep.subr.mxu0 0.0
        %560 = vmatpush1.msra.mxu0 0.0
        %561 = vmatprep.subr.mxu0 0.0
        %562 = vmatpush1.msra.mxu0 0.0
        %563 = vmatprep.subr.mxu0 0.0
        %564 = vmatpush1.msra.mxu0 0.0
        %565 = vmatprep.subr.mxu0 0.0
        %566 = vmatpush1.msra.mxu0 0.0
        %567 = vmatprep.subr.mxu0 0.0
        %568 = vmatpush1.msra.mxu0 0.0
        %569 = vmatprep.subr.mxu0 0.0
        %570 = vmatpush1.msra.mxu0 0.0
        %571 = vmatprep.subr.mxu0 0.0
        %572 = vmatpush1.msra.mxu0 0.0
        %573 = vmatprep.subr.mxu0 0.0
        %574 = vmatpush1.msra.mxu0 0.0
        %575 = vmatprep.subr.mxu0 0.0
        %576 = vmatpush1.msra.mxu0 0.0
        %577 = vmatprep.mubr.f32.mxu0 0.0
        %578 = vmatmul.mubr.f32.gmra.mrb[0].mxu0 %v511
        %v579 = vpop.f32.mrb[0].mxu0
        %v580 = vadd.f32 0.0, %v579
        %v581 = vpop.f32.mrb[0].mxu0
        %582 = vdwg.mxu0
        %v583 = vld [vmem:[#allocation2] sm:$0xff]
        %v584 = vld [vmem:[%s322] sm:$0xff]
        %v586 = vsel %vm419, %v580, 0
        %588 = vmatprep.subr.mxu0 0.0
        %589 = vmatpush1.msra.mxu0 %v584
        %590 = vmatprep.subr.mxu0 0.0
        %591 = vmatpush1.msra.mxu0 0.0
        %592 = vmatprep.subr.mxu0 0.0
        %593 = vmatpush1.msra.mxu0 0.0
        %594 = vmatprep.subr.mxu0 0.0
        %595 = vmatpush1.msra.mxu0 0.0
        %596 = vmatprep.subr.mxu0 0.0
        %597 = vmatpush1.msra.mxu0 0.0
        %598 = vmatprep.subr.mxu0 0.0
        %599 = vmatpush1.msra.mxu0 0.0
        %600 = vmatprep.subr.mxu0 0.0
        %601 = vmatpush1.msra.mxu0 0.0
        %602 = vmatprep.subr.mxu0 0.0
        %603 = vmatpush1.msra.mxu0 0.0
        %604 = vmatprep.subr.mxu0 0.0
        %605 = vmatpush1.msra.mxu0 0.0
        %606 = vmatprep.subr.mxu0 0.0
        %607 = vmatpush1.msra.mxu0 0.0
        %608 = vmatprep.subr.mxu0 0.0
        %609 = vmatpush1.msra.mxu0 0.0
        %610 = vmatprep.subr.mxu0 0.0
        %611 = vmatpush1.msra.mxu0 0.0
        %612 = vmatprep.subr.mxu0 0.0
        %613 = vmatpush1.msra.mxu0 0.0
        %614 = vmatprep.subr.mxu0 0.0
        %615 = vmatpush1.msra.mxu0 0.0
        %616 = vmatprep.subr.mxu0 0.0
        %617 = vmatpush1.msra.mxu0 0.0
        %618 = vmatprep.subr.mxu0 0.0
        %619 = vmatpush1.msra.mxu0 0.0
        %620 = vmatprep.subr.mxu0 0.0
        %621 = vmatpush1.msra.mxu0 0.0
        %622 = vmatprep.subr.mxu0 0.0
        %623 = vmatpush1.msra.mxu0 0.0
        %624 = vmatprep.subr.mxu0 0.0
        %625 = vmatpush1.msra.mxu0 0.0
        %626 = vmatprep.subr.mxu0 0.0
        %627 = vmatpush1.msra.mxu0 0.0
        %628 = vmatprep.subr.mxu0 0.0
        %629 = vmatpush1.msra.mxu0 0.0
        %630 = vmatprep.subr.mxu0 0.0
        %631 = vmatpush1.msra.mxu0 0.0
        %632 = vmatprep.subr.mxu0 0.0
        %633 = vmatpush1.msra.mxu0 0.0
        %634 = vmatprep.subr.mxu0 0.0
        %635 = vmatpush1.msra.mxu0 0.0
        %636 = vmatprep.subr.mxu0 0.0
        %637 = vmatpush1.msra.mxu0 0.0
        %638 = vmatprep.subr.mxu0 0.0
        %639 = vmatpush1.msra.mxu0 0.0
        %640 = vmatprep.subr.mxu0 0.0
        %641 = vmatpush1.msra.mxu0 0.0
        %642 = vmatprep.subr.mxu0 0.0
        %643 = vmatpush1.msra.mxu0 0.0
        %644 = vmatprep.subr.mxu0 0.0
        %645 = vmatpush1.msra.mxu0 0.0
        %646 = vmatprep.subr.mxu0 0.0
        %647 = vmatpush1.msra.mxu0 0.0
        %648 = vmatprep.subr.mxu0 0.0
        %649 = vmatpush1.msra.mxu0 0.0
        %650 = vmatprep.subr.mxu0 0.0
        %651 = vmatpush1.msra.mxu0 0.0
        %652 = vmatprep.mubr.f32.mxu0 0.0
        %653 = vmatmul.mubr.f32.gmra.mrb[0].mxu0 %v586
        %v654 = vpop.f32.mrb[0].mxu0
        %v655 = vadd.f32 0.0, %v654
        %v656 = vpop.f32.mrb[0].mxu0
        %657 = vdwg.mxu0
        %v658 = vadd.f32 %v583, %v655
        %659 = vst.msk [vmem:[#allocation2] sm:$0xff] %vm341, %v658
        %p660 = scmp.eq.s32.totalorder %s29, 3
        // Predicated region
        $region45: #{tpu_custom_call.1} parent=39 // pred_check
          %p661 = pneg %p660
        $region46: #{tpu_custom_call.1} parent=39 // pred_check_branch
          %663 = sbr.rel (%p661) target = $region48
        $region47: #{tpu_custom_call.1} parent=39 // pred_region
          %v664 = vld [vmem:[#allocation2] sm:$0xff]
          %v665 = vld [vmem:[%s4] sm:$0x1]
          %v667 = vlaneseq
          %v668 = vshrl.u32 %v667, 7
          %v669 = vsub.s32 0, %v668
          %v670 = vrot.slane %v665, %v669
          %v672 = vadd.f32 %v664, %v670
          %673 = vst.msk [vmem:[%s299] sm:$0xff] %vm341, %v672
        $region48: #{tpu_custom_call.1} parent=39 // pred_fallthru
          _
        %s674 = sand.u32 %s169, 1
        %s675 = scalar_lea.sflag [#allocation4], %s674
        %s676 = sand.u32 %s169, 1
        %s677 = smul.addr %s676, 8
        %s678 = scalar_lea.vmem [#allocation3], %s677
        %s679 = sand.u32 %s197, 1
        %s680 = scalar_lea.sflag [#allocation6], %s679
        %s681 = sand.u32 %s197, 1
        %s682 = smul.addr %s681, 8
        %s683 = scalar_lea.vmem [#allocation5], %s682
        // Predicated region
        $region49: #{tpu_custom_call.1} parent=39 // pred_check
          %p684 = pneg %p179
        $region50: #{tpu_custom_call.1} parent=39 // pred_check_branch
          %686 = sbr.rel (%p684) target = $region52
        $region51: #{tpu_custom_call.1} parent=39 // pred_region
          %s688 = ssub.s32 128, 128
          %689 = vsyncadd %s675, %s688
          %s690 = smul.addr %s28, 128
          %s691 = scalar_lea.hbm %s5, %s690
          %s693 = sshll.u32 %s678, 4
          %s694 = int_to_ptr.vmem [resolvable:$true] %s693
          %696 = dma.vmem_to_hbm [thread:$0]  %s694, 128, %s691, %s675
        $region52: #{tpu_custom_call.1} parent=39 // pred_fallthru
          _
        // Predicated region
        $region53: #{tpu_custom_call.1} parent=39 // pred_check
          %p697 = pneg %p207
        $region54: #{tpu_custom_call.1} parent=39 // pred_check_branch
          %699 = sbr.rel (%p697) target = $region56
        $region55: #{tpu_custom_call.1} parent=39 // pred_region
          %s701 = ssub.s32 128, 128
          %702 = vsyncadd %s680, %s701
          %s703 = smul.addr %s28, 4
          %s704 = sadd.s32 %s29, %s703
          %s705 = smul.addr %s704, 128
          %s706 = scalar_lea.hbm %s6, %s705
          %s708 = sshll.u32 %s683, 4
          %s709 = int_to_ptr.vmem [resolvable:$true] %s708
          %711 = dma.vmem_to_hbm [thread:$0]  %s709, 128, %s706, %s680
        $region56: #{tpu_custom_call.1} parent=39 // pred_fallthru
          _
      $region40: #{tpu_custom_call.1} parent=5 // pred_fallthru
        _
      %p712 = scmp.le.s32.totalorder 2, %s19
      // Predicated region
      $region57: #{tpu_custom_call.1} parent=5 // pred_check
        %p713 = pneg %p712
      $region58: #{tpu_custom_call.1} parent=5 // pred_check_branch
        %715 = sbr.rel (%p713) target = $region60
      $region59: #{tpu_custom_call.1} parent=5 // pred_region
        %s716 = ssub.s32 %s19, 2
        // Predicated region
        $region61: #{tpu_custom_call.1} parent=59 // pred_check
          %p717 = pneg %p185
        $region62: #{tpu_custom_call.1} parent=59 // pred_check_branch
          %719 = sbr.rel (%p717) target = $region64
        $region63: #{tpu_custom_call.1} parent=59 // pred_region
          %s720 = sand.u32 %s170, 1
          %s721 = scalar_lea.sflag [#allocation4], %s720
          %s722 = sand.u32 %s170, 1
          %s723 = smul.addr %s722, 8
          %s724 = scalar_lea.vmem [#allocation3], %s723
          %725 = dma.done %s721, 128
        $region64: #{tpu_custom_call.1} parent=59 // pred_fallthru
          _
        // Predicated region
        $region65: #{tpu_custom_call.1} parent=59 // pred_check
          %p726 = pneg %p213
        $region66: #{tpu_custom_call.1} parent=59 // pred_check_branch
          %728 = sbr.rel (%p726) target = $region68
        $region67: #{tpu_custom_call.1} parent=59 // pred_region
          %s729 = sand.u32 %s198, 1
          %s730 = scalar_lea.sflag [#allocation6], %s729
          %s731 = sand.u32 %s198, 1
          %s732 = smul.addr %s731, 8
          %s733 = scalar_lea.vmem [#allocation5], %s732
          %734 = dma.done %s730, 128
        $region68: #{tpu_custom_call.1} parent=59 // pred_fallthru
          _
      $region60: #{tpu_custom_call.1} parent=5 // pred_fallthru
        _
    $region6: #{tpu_custom_call.1} parent=1 // loop_footer
      %s23 = sadd.s32 1, %s19
    $region7: #{tpu_custom_call.1} parent=1 // loop_footer_branch
      %18 = sbr.rel target = $region3
    $region8: #{tpu_custom_call.1} parent=1 // loop_exit
      _
    %735 = vsyncpa [#allocation4], 1
    %s736 = scalar_lea.sflag [#allocation4], 1
    %737 = vsyncpa %s736, 1
    %738 = vsyncpa [#allocation6], 1
    %s739 = scalar_lea.sflag [#allocation6], 1
    %740 = vsyncpa %s739, 1

</llo_original>
